<compile_context>
chip_gen: v6e
topology: v6e:2x2x1
jax: 0.10.0
libtpu: 0.0.40
codegen_flags: <defaults>
</compile_context>

<pallas_src>
import functools
import math

import jax
import jax.numpy as jnp
from jax import lax
from jax.experimental import pallas as pl
from jax.experimental.pallas import tpu as pltpu

POS_MARGIN = 0.0
NEG_MARGIN = 1.0


def _round_up(x, m):
    return ((x + m - 1) // m) * m


def _default_tm_target():
    """256-row tiles on 256-wide-MXU chips (v6e/v7x), 128 otherwise."""
    try:
        kind = jax.devices()[0].device_kind.lower()
    except Exception:
        return 128
    return 256 if ("v6" in kind or "v7" in kind) else 128


# ----------------------------- Pallas kernel ------------------------------- #
def _contrastive_kernel(lbl_col_ref, lbl_row_ref, xr_ref, xc_ref, out_ref, *,
                        tm, tn, true_n, has_pad):
    """One (tm x tn) tile of the N_pad x N_pad pair matrix per grid step.

    Embeddings are pre-L2-normalized bf16, so d2 = 2 - 2 * <x_i, x_j> (one MXU
    matmul, f32 accumulate).  Per-row-tile partials
    [pos_sum, pos_cnt, neg_sum, neg_cnt] accumulate into rows 0..3 of the
    resident (8, 128) output block across the inner ("arbitrary") column axis.
    """
    i = pl.program_id(0)
    j = pl.program_id(1)

    @pl.when(j == 0)
    def _():
        out_ref[...] = jnp.zeros_like(out_ref)

    x_i = xr_ref[...]                                   # (tm, Dp) bf16, unit rows
    x_j = xc_ref[...]                                   # (tn, Dp) bf16, unit rows

    # Contract dim 1 of both operands: no transpose op, straight to the MXU.
    dots = lax.dot_general(x_i, x_j, (((1,), (1,)), ((), ())),
                           preferred_element_type=jnp.float32)      # (tm, tn)
    d2 = jnp.maximum(2.0 - 2.0 * dots, 0.0)
    d = jnp.sqrt(d2)                                                # EUP slot

    lbl_i = lbl_col_ref[...]                                        # (tm, 1) int32
    lbl_j = lbl_row_ref[...]                                        # (1, tn) int32
    same = lbl_i == lbl_j                                           # (tm, tn)

    # Diagonal exclusion: one full-tile column iota + one (tm,1) row iota.
    col_g = lax.broadcasted_iota(jnp.int32, (tm, tn), 1) + j * tn   # (tm, tn)
    row_g = lax.broadcasted_iota(jnp.int32, (tm, 1), 0) + i * tm    # (tm, 1)
    not_diag = col_g != row_g

    pos_mask = jnp.logical_and(same, not_diag)
    neg_mask = jnp.logical_not(same)
    if has_pad:
        # Exclude padded rows/columns (pad labels are unique sentinels too,
        # but the explicit mask keeps pad pairs out of sums AND counts).
        valid = jnp.logical_and(row_g < true_n, col_g < true_n)
        pos_mask = jnp.logical_and(pos_mask, valid)
        neg_mask = jnp.logical_and(neg_mask, valid)

    # pos_margin == 0  =>  pos_loss is simply d; count nonzero via d2 > 0.
    pos_sum = jnp.sum(jnp.where(pos_mask, d, 0.0))
    pos_cnt = jnp.sum(jnp.where(jnp.logical_and(pos_mask, d2 > 0.0), 1.0, 0.0))

    # neg_loss = max(neg_margin - d, 0); nonzero exactly when d < neg_margin.
    neg_hit = jnp.logical_and(neg_mask, d < NEG_MARGIN)
    neg_sum = jnp.sum(jnp.where(neg_hit, NEG_MARGIN - d, 0.0))
    neg_cnt = jnp.sum(jnp.where(neg_hit, 1.0, 0.0))

    # Pack the 4 partials into rows 0..3 of this row-tile's (8,128) block.
    rid = lax.broadcasted_iota(jnp.int32, (8, 128), 0)
    blk = jnp.where(rid == 0, pos_sum, 0.0)
    blk = jnp.where(rid == 1, pos_cnt, blk)
    blk = jnp.where(rid == 2, neg_sum, blk)
    blk = jnp.where(rid == 3, neg_cnt, blk)
    out_ref[...] += blk


def contrastive_loss_pallas(embeddings, labels, *, tm_target=None,
                            tn_target=512):
    """ContrastiveLoss forward over gathered embeddings via a Pallas TPU kernel."""
    n, d = embeddings.shape
    if tm_target is None:
        tm_target = _default_tm_target()

    # ---- padding / tiling decisions (all static) --------------------------- #
    d_pad = _round_up(d, 128)                       # lane-clean contraction dim
    n_pad = _round_up(n, 128)                       # at least 128-row MXU fill
    tm = tm_target if (tm_target == 256 and n_pad % 256 == 0) else 128
    # column tile: bounded VMEM independent of N
    if n_pad % tn_target == 0:
        tn = tn_target
    elif n_pad % 256 == 0:
        tn = 256
    else:
        tn = 128
    num_i = n_pad // tm
    num_j = n_pad // tn
    has_pad = n_pad > n

    # ---- preprocessing: normalize once in f32, pad, cast to bf16 ----------- #
    x = embeddings.astype(jnp.float32)
    x = x * lax.rsqrt(jnp.sum(x * x, axis=-1, keepdims=True) + 1e-12)
    x = jnp.pad(x, ((0, n_pad - n), (0, d_pad - d)))      # zero-pad keeps norms
    x_bf16 = x.astype(jnp.bfloat16)

    lbl = labels.astype(jnp.int32)
    if has_pad:
        # Unique negative sentinels: pad rows never label-match anything.
        pad_lbl = -(jnp.arange(n_pad - n, dtype=jnp.int32) + 1)
        lbl = jnp.concatenate([lbl, pad_lbl], axis=0)
    lbl_col = lbl.reshape(n_pad, 1)
    lbl_row = lbl.reshape(1, n_pad)

    # ---- VMEM budget (double-buffered tiles + f32 temporaries) ------------- #
    vmem_bytes = (2 * tm * d_pad * 2 + 2 * tn * d_pad * 2        # bf16 x tiles
                  + 2 * tm * 128 * 4 + 2 * 8 * tn * 4            # label tiles (vreg-padded)
                  + 2 * 8 * 128 * 4                              # output block
                  + 12 * tm * tn * 4)                            # f32 temporaries headroom
    vmem_limit = int(min(max(vmem_bytes + (4 << 20), 32 << 20), 64 << 20))

    kernel = functools.partial(_contrastive_kernel, tm=tm, tn=tn,
                               true_n=n, has_pad=has_pad)
    partials = pl.pallas_call(
        kernel,
        out_shape=jax.ShapeDtypeStruct((num_i * 8, 128), jnp.float32),
        grid_spec=pltpu.PrefetchScalarGridSpec(
            num_scalar_prefetch=0,
            grid=(num_i, num_j),
            in_specs=[
                pl.BlockSpec((tm, 1), lambda i, j: (i, 0)),       # labels, row tile
                pl.BlockSpec((1, tn), lambda i, j: (0, j)),       # labels, col tile
                pl.BlockSpec((tm, d_pad), lambda i, j: (i, 0)),   # embeddings, row tile
                pl.BlockSpec((tn, d_pad), lambda i, j: (j, 0)),   # embeddings, col tile
            ],
            out_specs=pl.BlockSpec((8, 128), lambda i, j: (i, 0)),
        ),
        compiler_params=pltpu.CompilerParams(
            dimension_semantics=("parallel", "arbitrary"),
            vmem_limit_bytes=vmem_limit),
    )(lbl_col, lbl_row, x_bf16, x_bf16)

    # AvgNonZeroReducer combine (tiny, plain JAX). Counts -> int32 for exactness.
    parts = partials.reshape(num_i, 8, 128)[:, :4, 0]             # (num_i, 4)
    pos_sum = jnp.sum(parts[:, 0])
    pos_cnt = jnp.sum(jnp.round(parts[:, 1]).astype(jnp.int32))
    neg_sum = jnp.sum(parts[:, 2])
    neg_cnt = jnp.sum(jnp.round(parts[:, 3]).astype(jnp.int32))
    pos_avg = jnp.where(pos_cnt > 0,
                        pos_sum / jnp.maximum(pos_cnt, 1).astype(jnp.float32), 0.0)
    neg_avg = jnp.where(neg_cnt > 0,
                        neg_sum / jnp.maximum(neg_cnt, 1).astype(jnp.float32), 0.0)
    return pos_avg + neg_avg


# ------------------------------ JAX glue ------------------------------------ #
def all_gather_embeddings_labels(embeddings, labels):
    """c_f.all_gather_embeddings_labels analogue.

    Inputs are the per-rank shards stacked on a leading world axis:
      embeddings: (world, local_batch, D), labels: (world, local_batch).
    Every rank ends up with the concatenation over ranks.
    """
    # TODO(synk): the real torch.distributed all_gather needs a multi-host mesh;
    # a production version would fuse it with the loss by ring-streaming remote
    # shards (pltpu.make_async_remote_copy) and accumulating per-shard partials
    # instead of materializing the gathered tensor. Simulated single-process here.
    w, b, d = embeddings.shape
    return embeddings.reshape(w * b, d), labels.reshape(w * b)


class DistributedLossWrapper:
    """JAX/Pallas analogue of pytorch_metric_learning's DistributedLossWrapper."""

    def __init__(self, loss):
        self.loss = loss

    def __call__(self, embeddings, labels, indices_tuple=None):
        embeddings, labels = all_gather_embeddings_labels(embeddings, labels)
        # indices_tuple mining is not used by the default loss path.
        return self.loss(embeddings, labels)


# --------------------------- pure-JAX reference ----------------------------- #
def _contrastive_loss_ref(embeddings, labels):
    x = embeddings.astype(jnp.float32)
    x = x / jnp.sqrt(jnp.sum(x * x, axis=-1, keepdims=True) + 1e-12)
    d2 = (jnp.sum(x * x, -1)[:, None] + jnp.sum(x * x, -1)[None, :]
          - 2.0 * x @ x.T)
    dist = jnp.sqrt(jnp.maximum(d2, 0.0))
    same = labels[:, None] == labels[None, :]
    not_diag = ~jnp.eye(labels.shape[0], dtype=bool)
    pos_vals = jnp.where(same & not_diag, jnp.maximum(dist - POS_MARGIN, 0.0), 0.0)
    neg_vals = jnp.where(~same, jnp.maximum(NEG_MARGIN - dist, 0.0), 0.0)
    pc = jnp.sum(pos_vals > 0)
    nc = jnp.sum(neg_vals > 0)
    pos_avg = jnp.where(pc > 0, jnp.sum(pos_vals) / jnp.maximum(pc, 1), 0.0)
    neg_avg = jnp.where(nc > 0, jnp.sum(neg_vals) / jnp.maximum(nc, 1), 0.0)
    return pos_avg + neg_avg


# --------------------------------- main -------------------------------------- #
if __name__ == "__main__":
    key = jax.random.PRNGKey(0)
    world, local_batch, dim, num_classes = 2, 8, 32, 4

    k_emb, k_lbl = jax.random.split(key)
    embeddings = jax.random.normal(k_emb, (world, local_batch, dim), jnp.float32)
    labels = jax.random.randint(k_lbl, (world, local_batch), 0, num_classes, jnp.int32)

    wrapper = DistributedLossWrapper(loss=contrastive_loss_pallas)
    loss = wrapper(embeddings, labels)
    loss = jax.block_until_ready(loss)

    emb_g, lbl_g = all_gather_embeddings_labels(embeddings, labels)
    ref = jax.block_until_ready(_contrastive_loss_ref(emb_g, lbl_g))
    # bf16 MXU operands shift distances at the ~1e-3 level; tolerance relaxed.
    assert jnp.allclose(loss, ref, rtol=3e-2, atol=3e-2), (loss, ref)

    print("KERNEL_OK")
</pallas_src>

<mosaic_0001>
module attributes {stable_mosaic.version = 11 : i64} {
  func.func @_contrastive_kernel(%arg0: i32, %arg1: i32, %arg2: memref<128x1xi32, #tpu.memory_space<vmem>>, %arg3: memref<1x128xi32, #tpu.memory_space<vmem>>, %arg4: memref<128x128xbf16, #tpu.memory_space<vmem>>, %arg5: memref<128x128xbf16, #tpu.memory_space<vmem>>, %arg6: memref<8x128xf32, #tpu.memory_space<vmem>>) attributes {dimension_semantics = [#tpu.dimension_semantics<parallel>, #tpu.dimension_semantics<arbitrary>], iteration_bounds = array<i64: 1, 1>, scalar_prefetch = 0 : i64, scratch_operands = 0 : i64, tpu.core_type = #tpu.core_type<tc>, window_params = [{transform_indices = @transform_0, window_bounds = array<i64: 128, 1>}, {transform_indices = @transform_1, window_bounds = array<i64: 1, 128>}, {transform_indices = @transform_2, window_bounds = array<i64: 128, 128>}, {transform_indices = @transform_3, window_bounds = array<i64: 128, 128>}, {transform_indices = @transform_4, window_bounds = array<i64: 8, 128>}]} {
    %c0_i32 = arith.constant 0 : i32
    %0 = arith.cmpi eq, %arg1, %c0_i32 : i32
    %1 = arith.extui %0 : i1 to i32
    %c0_i32_0 = arith.constant 0 : i32
    %2 = arith.cmpi ne, %1, %c0_i32_0 : i32
    scf.if %2 {
      %cst_33 = arith.constant 0.000000e+00 : f32
      %93 = vector.broadcast %cst_33 : f32 to vector<8x128xf32>
      %c0_34 = arith.constant 0 : index
      %c0_35 = arith.constant 0 : index
      %94 = vector.load %arg6[%c0_34, %c0_35] : memref<8x128xf32, #tpu.memory_space<vmem>>, vector<8x128xf32>
      tpu.vector_store %arg6[%c0_34, %c0_35], %93 {strides = array<i32>} : memref<8x128xf32, #tpu.memory_space<vmem>>, vector<8x128xf32>,
    } else {
    }
    %c0 = arith.constant 0 : index
    %c0_1 = arith.constant 0 : index
    %3 = vector.load %arg4[%c0, %c0_1] : memref<128x128xbf16, #tpu.memory_space<vmem>>, vector<128x128xbf16>
    %c0_2 = arith.constant 0 : index
    %c0_3 = arith.constant 0 : index
    %4 = vector.load %arg5[%c0_2, %c0_3] : memref<128x128xbf16, #tpu.memory_space<vmem>>, vector<128x128xbf16>
    %cst = arith.constant dense<0.000000e+00> : vector<128x128xf32>
    %5 = tpu.matmul %3, %4, %cst {dimension_numbers = #tpu.dot_dimension_numbers<[1], [1], [0], [0], [0, 0, 1, 0], [], []>} : vector<128x128xbf16>, vector<128x128xbf16>, vector<128x128xf32> -> vector<128x128xf32>
    %cst_4 = arith.constant 2.000000e+00 : f32
    %6 = vector.broadcast %cst_4 : f32 to vector<128x128xf32>
    %7 = arith.mulf %6, %5 : vector<128x128xf32>
    %cst_5 = arith.constant 2.000000e+00 : f32
    %8 = vector.broadcast %cst_5 : f32 to vector<128x128xf32>
    %9 = arith.subf %8, %7 : vector<128x128xf32>
    %cst_6 = arith.constant 0.000000e+00 : f32
    %10 = vector.broadcast %cst_6 : f32 to vector<128x128xf32>
    %11 = arith.maximumf %9, %10 : vector<128x128xf32>
    %12 = math.sqrt %11 : vector<128x128xf32>
    %c0_7 = arith.constant 0 : index
    %c0_8 = arith.constant 0 : index
    %13 = vector.load %arg2[%c0_7, %c0_8] : memref<128x1xi32, #tpu.memory_space<vmem>>, vector<128x1xi32>
    %c0_9 = arith.constant 0 : index
    %c0_10 = arith.constant 0 : index
    %14 = vector.load %arg3[%c0_9, %c0_10] : memref<1x128xi32, #tpu.memory_space<vmem>>, vector<1x128xi32>
    %15 = vector.broadcast %13 : vector<128x1xi32> to vector<128x128xi32>
    %16 = vector.broadcast %14 : vector<1x128xi32> to vector<128x128xi32>
    %17 = arith.cmpi eq, %15, %16 : vector<128x128xi32>
    %18 = tpu.iota {dimensions = array<i32: 1>} : vector<128x128xi32>
    %c128_i32 = arith.constant 128 : i32
    %19 = arith.muli %arg1, %c128_i32 : i32
    %20 = vector.broadcast %19 : i32 to vector<128x128xi32>
    %21 = arith.addi %18, %20 : vector<128x128xi32>
    %22 = tpu.iota {dimensions = array<i32: 0>} : vector<128x1xi32>
    %c128_i32_11 = arith.constant 128 : i32
    %23 = arith.muli %arg0, %c128_i32_11 : i32
    %24 = vector.broadcast %23 : i32 to vector<128x1xi32>
    %25 = arith.addi %22, %24 : vector<128x1xi32>
    %26 = vector.broadcast %25 : vector<128x1xi32> to vector<128x128xi32>
    %27 = arith.cmpi ne, %21, %26 : vector<128x128xi32>
    %28 = arith.andi %17, %27 : vector<128x128xi1>
    %cst_12 = arith.constant dense<true> : vector<128x128xi1>
    %29 = arith.xori %17, %cst_12 : vector<128x128xi1>
    %c16_i32 = arith.constant 16 : i32
    %30 = vector.broadcast %c16_i32 : i32 to vector<128x1xi32>
    %31 = arith.cmpi slt, %25, %30 : vector<128x1xi32>
    %c16_i32_13 = arith.constant 16 : i32
    %32 = vector.broadcast %c16_i32_13 : i32 to vector<128x128xi32>
    %33 = arith.cmpi slt, %21, %32 : vector<128x128xi32>
    %34 = vector.broadcast %31 : vector<128x1xi1> to vector<128x128xi1>
    %35 = arith.andi %34, %33 : vector<128x128xi1>
    %36 = arith.andi %28, %35 : vector<128x128xi1>
    %37 = arith.andi %29, %35 : vector<128x128xi1>
    %cst_14 = arith.constant 0.000000e+00 : f32
    %38 = vector.broadcast %cst_14 : f32 to vector<128x128xf32>
    %39 = arith.select %36, %12, %38 : vector<128x128xi1>, vector<128x128xf32>
    %40 = vector.shape_cast %39 : vector<128x128xf32> to vector<1x128x128xf32>
    %cst_15 = arith.constant dense<0.000000e+00> : vector<1xf32>
    %41 = vector.multi_reduction <add>, %40, %cst_15 [1, 2] : vector<1x128x128xf32> to vector<1xf32>
    %42 = vector.shape_cast %41 : vector<1xf32> to vector<1x1x1xf32>
    %43 = vector.extract %42[0, 0, 0] : f32 from vector<1x1x1xf32>
    %cst_16 = arith.constant 0.000000e+00 : f32
    %44 = vector.broadcast %cst_16 : f32 to vector<128x128xf32>
    %45 = arith.cmpf ogt, %11, %44 : vector<128x128xf32>
    %46 = arith.andi %36, %45 : vector<128x128xi1>
    %cst_17 = arith.constant 1.000000e+00 : f32
    %cst_18 = arith.constant 0.000000e+00 : f32
    %47 = vector.broadcast %cst_17 : f32 to vector<128x128xf32>
    %48 = vector.broadcast %cst_18 : f32 to vector<128x128xf32>
    %49 = arith.select %46, %47, %48 : vector<128x128xi1>, vector<128x128xf32>
    %50 = vector.shape_cast %49 : vector<128x128xf32> to vector<1x128x128xf32>
    %cst_19 = arith.constant dense<0.000000e+00> : vector<1xf32>
    %51 = vector.multi_reduction <add>, %50, %cst_19 [1, 2] : vector<1x128x128xf32> to vector<1xf32>
    %52 = vector.shape_cast %51 : vector<1xf32> to vector<1x1x1xf32>
    %53 = vector.extract %52[0, 0, 0] : f32 from vector<1x1x1xf32>
    %cst_20 = arith.constant 1.000000e+00 : f32
    %54 = vector.broadcast %cst_20 : f32 to vector<128x128xf32>
    %55 = arith.cmpf olt, %12, %54 : vector<128x128xf32>
    %56 = arith.andi %37, %55 : vector<128x128xi1>
    %cst_21 = arith.constant 1.000000e+00 : f32
    %57 = vector.broadcast %cst_21 : f32 to vector<128x128xf32>
    %58 = arith.subf %57, %12 : vector<128x128xf32>
    %cst_22 = arith.constant 0.000000e+00 : f32
    %59 = vector.broadcast %cst_22 : f32 to vector<128x128xf32>
    %60 = arith.select %56, %58, %59 : vector<128x128xi1>, vector<128x128xf32>
    %61 = vector.shape_cast %60 : vector<128x128xf32> to vector<1x128x128xf32>
    %cst_23 = arith.constant dense<0.000000e+00> : vector<1xf32>
    %62 = vector.multi_reduction <add>, %61, %cst_23 [1, 2] : vector<1x128x128xf32> to vector<1xf32>
    %63 = vector.shape_cast %62 : vector<1xf32> to vector<1x1x1xf32>
    %64 = vector.extract %63[0, 0, 0] : f32 from vector<1x1x1xf32>
    %cst_24 = arith.constant 1.000000e+00 : f32
    %cst_25 = arith.constant 0.000000e+00 : f32
    %65 = vector.broadcast %cst_24 : f32 to vector<128x128xf32>
    %66 = vector.broadcast %cst_25 : f32 to vector<128x128xf32>
    %67 = arith.select %56, %65, %66 : vector<128x128xi1>, vector<128x128xf32>
    %68 = vector.shape_cast %67 : vector<128x128xf32> to vector<1x128x128xf32>
    %cst_26 = arith.constant dense<0.000000e+00> : vector<1xf32>
    %69 = vector.multi_reduction <add>, %68, %cst_26 [1, 2] : vector<1x128x128xf32> to vector<1xf32>
    %70 = vector.shape_cast %69 : vector<1xf32> to vector<1x1x1xf32>
    %71 = vector.extract %70[0, 0, 0] : f32 from vector<1x1x1xf32>
    %72 = tpu.iota {dimensions = array<i32: 0>} : vector<8x128xi32>
    %c0_i32_27 = arith.constant 0 : i32
    %73 = vector.broadcast %c0_i32_27 : i32 to vector<8x128xi32>
    %74 = arith.cmpi eq, %72, %73 : vector<8x128xi32>
    %cst_28 = arith.constant 0.000000e+00 : f32
    %75 = vector.broadcast %43 : f32 to vector<8x128xf32>
    %76 = vector.broadcast %cst_28 : f32 to vector<8x128xf32>
    %77 = arith.select %74, %75, %76 : vector<8x128xi1>, vector<8x128xf32>
    %c1_i32 = arith.constant 1 : i32
    %78 = vector.broadcast %c1_i32 : i32 to vector<8x128xi32>
    %79 = arith.cmpi eq, %72, %78 : vector<8x128xi32>
    %80 = vector.broadcast %53 : f32 to vector<8x128xf32>
    %81 = arith.select %79, %80, %77 : vector<8x128xi1>, vector<8x128xf32>
    %c2_i32 = arith.constant 2 : i32
    %82 = vector.broadcast %c2_i32 : i32 to vector<8x128xi32>
    %83 = arith.cmpi eq, %72, %82 : vector<8x128xi32>
    %84 = vector.broadcast %64 : f32 to vector<8x128xf32>
    %85 = arith.select %83, %84, %81 : vector<8x128xi1>, vector<8x128xf32>
    %c3_i32 = arith.constant 3 : i32
    %86 = vector.broadcast %c3_i32 : i32 to vector<8x128xi32>
    %87 = arith.cmpi eq, %72, %86 : vector<8x128xi32>
    %88 = vector.broadcast %71 : f32 to vector<8x128xf32>
    %89 = arith.select %87, %88, %85 : vector<8x128xi1>, vector<8x128xf32>
    %c0_29 = arith.constant 0 : index
    %c0_30 = arith.constant 0 : index
    %90 = vector.load %arg6[%c0_29, %c0_30] : memref<8x128xf32, #tpu.memory_space<vmem>>, vector<8x128xf32>
    %91 = arith.addf %90, %89 : vector<8x128xf32>
    %c0_31 = arith.constant 0 : index
    %c0_32 = arith.constant 0 : index
    %92 = vector.load %arg6[%c0_31, %c0_32] : memref<8x128xf32, #tpu.memory_space<vmem>>, vector<8x128xf32>
    tpu.vector_store %arg6[%c0_31, %c0_32], %91 {strides = array<i32>} : memref<8x128xf32, #tpu.memory_space<vmem>>, vector<8x128xf32>,
    return
  }
  func.func @transform_0(%arg0: i32, %arg1: i32) -> (i32, i32) {
    %c0_i32 = arith.constant 0 : i32
    %c0_i32_0 = arith.constant 0 : i32
    return %arg0, %c0_i32 : i32, i32
  }
  func.func @transform_1(%arg0: i32, %arg1: i32) -> (i32, i32) {
    %c0_i32 = arith.constant 0 : i32
    %c0_i32_0 = arith.constant 0 : i32
    return %c0_i32, %arg1 : i32, i32
  }
  func.func @transform_2(%arg0: i32, %arg1: i32) -> (i32, i32) {
    %c0_i32 = arith.constant 0 : i32
    %c0_i32_0 = arith.constant 0 : i32
    return %arg0, %c0_i32 : i32, i32
  }
  func.func @transform_3(%arg0: i32, %arg1: i32) -> (i32, i32) {
    %c0_i32 = arith.constant 0 : i32
    %c0_i32_0 = arith.constant 0 : i32
    return %arg1, %c0_i32 : i32, i32
  }
  func.func @transform_4(%arg0: i32, %arg1: i32) -> (i32, i32) {
    %c0_i32 = arith.constant 0 : i32
    %c0_i32_0 = arith.constant 0 : i32
    return %arg0, %c0_i32 : i32, i32
  }
}

</mosaic_0001>

<llo_original>
// kernel: tpu_custom_call.1
$region0: #{tpu_custom_call.1}
  #allocation0 [shape = 'u32[]', space=smem, size = 0x4, offset = 0x4, fixed_abs, tag = 'smem constant byte address 0x4 - core index']
  #allocation1 [shape = 'u32[144,128]{1,0:T(1,128)}', space=vmem, size = 0x12000, scoped, tag = 'internal scratch']
  %s0 = inlined_call_operand.vmem [shape: s32[128,1], index: 0, kind: input, shape index: {}]
  %s1 = inlined_call_operand.vmem [shape: s32[1,128], index: 1, kind: input, shape index: {}]
  %s2 = inlined_call_operand.vmem [shape: bf16[128,128], index: 2, kind: input, shape index: {}]
  %s3 = inlined_call_operand.vmem [shape: bf16[128,128], index: 3, kind: input, shape index: {}]
  %s4 = inlined_call_operand.hbm [shape: f32[8,128], index: 4, kind: output, shape index: {}]
  %s5 = sld [smem:[#allocation0]]
  $region30: #{tpu_custom_call.1} parent=0
    _
  %s7 = ssub.s32 1, %s5
  %s8 = scalar_select 0, %s7, %s5
  $region1: #{tpu_custom_call.1} parent=0
    #allocation2 [shape = 'u8[4096]{0}', space=vmem, size = 0x1000, scoped, tag = 'output window, operand 0, single buffered']
    #allocation3 [shape = 's32[1]{0}', space=sflag, size = 0x4, scoped, tag = 'scoped memory for tpu_custom_call.1']
    %9 = vsyncpa [#allocation3], 0
    // Predicated region
    $region2: #{tpu_custom_call.1} parent=1 // pred_check
      _
    $region3: #{tpu_custom_call.1} parent=1 // pred_check_branch
      %11 = sbr.rel (0) target = $region5
    $region4: #{tpu_custom_call.1} parent=1 // pred_region
      _
    $region5: #{tpu_custom_call.1} parent=1 // pred_fallthru
      _
    // Predicated region
    $region6: #{tpu_custom_call.1} parent=1 // pred_check
      _
    $region7: #{tpu_custom_call.1} parent=1 // pred_check_branch
      %13 = sbr.rel (0) target = $region9
    $region8: #{tpu_custom_call.1} parent=1 // pred_region
      _
    $region9: #{tpu_custom_call.1} parent=1 // pred_fallthru
      _
    // Predicated region
    $region10: #{tpu_custom_call.1} parent=1 // pred_check
      _
    $region11: #{tpu_custom_call.1} parent=1 // pred_check_branch
      %15 = sbr.rel (0) target = $region13
    $region12: #{tpu_custom_call.1} parent=1 // pred_region
      _
    $region13: #{tpu_custom_call.1} parent=1 // pred_fallthru
      _
    // Predicated region
    $region14: #{tpu_custom_call.1} parent=1 // pred_check
      _
    $region15: #{tpu_custom_call.1} parent=1 // pred_check_branch
      %17 = sbr.rel (0) target = $region17
    $region16: #{tpu_custom_call.1} parent=1 // pred_region
      _
    $region17: #{tpu_custom_call.1} parent=1 // pred_fallthru
      _
    %p19 = scmp.eq.s32.totalorder 0, 0
    // Predicated region
    $region18: #{tpu_custom_call.1} parent=1 // pred_check
      %p20 = pneg %p19
    $region19: #{tpu_custom_call.1} parent=1 // pred_check_branch
      %22 = sbr.rel (%p20) target = $region21
    $region20: #{tpu_custom_call.1} parent=1 // pred_region
      %23 = vst [vmem:[#allocation2] sm:$0xff] 0.0
    $region21: #{tpu_custom_call.1} parent=1 // pred_fallthru
      _
    %v24 = vld [vmem:[%s2] sm:$0xf]
    %v25 = vld [vmem:[%s2 + $0x4] sm:$0xf]
    %v26 = vld [vmem:[%s2 + $0x8] sm:$0xf]
    %v27 = vld [vmem:[%s2 + $0xc] sm:$0xf]
    %v28 = vld [vmem:[%s2 + $0x10] sm:$0xf]
    %v29 = vld [vmem:[%s2 + $0x14] sm:$0xf]
    %v30 = vld [vmem:[%s2 + $0x18] sm:$0xf]
    %v31 = vld [vmem:[%s2 + $0x1c] sm:$0xf]
    %v32 = vld [vmem:[%s2 + $0x20] sm:$0xf]
    %v33 = vld [vmem:[%s2 + $0x24] sm:$0xf]
    %v34 = vld [vmem:[%s2 + $0x28] sm:$0xf]
    %v35 = vld [vmem:[%s2 + $0x2c] sm:$0xf]
    %v36 = vld [vmem:[%s2 + $0x30] sm:$0xf]
    %v37 = vld [vmem:[%s2 + $0x34] sm:$0xf]
    %v38 = vld [vmem:[%s2 + $0x38] sm:$0xf]
    %v39 = vld [vmem:[%s2 + $0x3c] sm:$0xf]
    %v40 = vld [vmem:[%s3] sm:$0xf]
    %v41 = vld [vmem:[%s3 + $0x4] sm:$0xf]
    %v42 = vld [vmem:[%s3 + $0x8] sm:$0xf]
    %v43 = vld [vmem:[%s3 + $0xc] sm:$0xf]
    %v44 = vld [vmem:[%s3 + $0x10] sm:$0xf]
    %v45 = vld [vmem:[%s3 + $0x14] sm:$0xf]
    %v46 = vld [vmem:[%s3 + $0x18] sm:$0xf]
    %v47 = vld [vmem:[%s3 + $0x1c] sm:$0xf]
    %v48 = vld [vmem:[%s3 + $0x20] sm:$0xf]
    %v49 = vld [vmem:[%s3 + $0x24] sm:$0xf]
    %v50 = vld [vmem:[%s3 + $0x28] sm:$0xf]
    %v51 = vld [vmem:[%s3 + $0x2c] sm:$0xf]
    %v52 = vld [vmem:[%s3 + $0x30] sm:$0xf]
    %v53 = vld [vmem:[%s3 + $0x34] sm:$0xf]
    %v54 = vld [vmem:[%s3 + $0x38] sm:$0xf]
    %v55 = vld [vmem:[%s3 + $0x3c] sm:$0xf]
    %v72 = vunpack.c.l.b16 %v24
    %v73 = vunpack.c.l.b16 %v25
    %v74 = vunpack.c.l.b16 %v26
    %v75 = vunpack.c.l.b16 %v27
    %v76 = vunpack.c.l.b16 %v28
    %v77 = vunpack.c.l.b16 %v29
    %v78 = vunpack.c.l.b16 %v30
    %v79 = vunpack.c.l.b16 %v31
    %v80 = vunpack.c.l.b16 %v32
    %v81 = vunpack.c.l.b16 %v33
    %v82 = vunpack.c.l.b16 %v34
    %v83 = vunpack.c.l.b16 %v35
    %v84 = vunpack.c.l.b16 %v36
    %v85 = vunpack.c.l.b16 %v37
    %v86 = vunpack.c.l.b16 %v38
    %v87 = vunpack.c.l.b16 %v39
    %v88 = vpack.c.b16 %v73, %v72
    %v89 = vpack.c.b16 %v75, %v74
    %v90 = vpack.c.b16 %v77, %v76
    %v91 = vpack.c.b16 %v79, %v78
    %v92 = vpack.c.b16 %v81, %v80
    %v93 = vpack.c.b16 %v83, %v82
    %v94 = vpack.c.b16 %v85, %v84
    %v95 = vpack.c.b16 %v87, %v86
    %v120 = vunpack.c.l.b16 %v40
    %v121 = vunpack.c.l.b16 %v41
    %v122 = vunpack.c.l.b16 %v42
    %v123 = vunpack.c.l.b16 %v43
    %v124 = vunpack.c.l.b16 %v44
    %v125 = vunpack.c.l.b16 %v45
    %v126 = vunpack.c.l.b16 %v46
    %v127 = vunpack.c.l.b16 %v47
    %v128 = vunpack.c.l.b16 %v48
    %v129 = vunpack.c.l.b16 %v49
    %v130 = vunpack.c.l.b16 %v50
    %v131 = vunpack.c.l.b16 %v51
    %v132 = vunpack.c.l.b16 %v52
    %v133 = vunpack.c.l.b16 %v53
    %v134 = vunpack.c.l.b16 %v54
    %v135 = vunpack.c.l.b16 %v55
    %v136 = vpack.c.b16 %v121, %v120
    %v137 = vpack.c.b16 %v123, %v122
    %v138 = vpack.c.b16 %v125, %v124
    %v139 = vpack.c.b16 %v127, %v126
    %v140 = vpack.c.b16 %v129, %v128
    %v141 = vpack.c.b16 %v131, %v130
    %v142 = vpack.c.b16 %v133, %v132
    %v143 = vpack.c.b16 %v135, %v134
    %152 = vmatprep.subr.bf16.mxu0 0
    %153 = vmatpush1.bf16.xpose.msra.mxu0 %v143
    %154 = vmatprep.subr.bf16.mxu0 0
    %155 = vmatpush1.bf16.xpose.msra.mxu0 %v142
    %156 = vmatprep.subr.bf16.mxu0 0
    %157 = vmatpush1.bf16.xpose.msra.mxu0 %v141
    %158 = vmatprep.subr.bf16.mxu0 0
    %159 = vmatpush1.bf16.xpose.msra.mxu0 %v140
    %160 = vmatprep.subr.bf16.mxu0 0
    %161 = vmatpush1.bf16.xpose.msra.mxu0 %v139
    %162 = vmatprep.subr.bf16.mxu0 0
    %163 = vmatpush1.bf16.xpose.msra.mxu0 %v138
    %164 = vmatprep.subr.bf16.mxu0 0
    %165 = vmatpush1.bf16.xpose.msra.mxu0 %v137
    %166 = vmatprep.subr.bf16.mxu0 0
    %167 = vmatpush1.bf16.xpose.msra.mxu0 %v136
    %168 = vmatprep.subr.bf16.mxu0 0
    %169 = vmatpush2.bf16.xpose.msra.mxu0 0
    %170 = vmatprep.subr.bf16.mxu0 0
    %171 = vmatpush2.bf16.xpose.msra.mxu0 0
    %172 = vmatprep.subr.bf16.mxu0 0
    %173 = vmatpush2.bf16.xpose.msra.mxu0 0
    %174 = vmatprep.subr.bf16.mxu0 0
    %175 = vmatpush2.bf16.xpose.msra.mxu0 0
    %176 = vmatprep.subr.bf16.mxu0 0
    %177 = vmatpush2.bf16.xpose.msra.mxu0 0
    %178 = vmatprep.subr.bf16.mxu0 0
    %179 = vmatpush2.bf16.xpose.msra.mxu0 0
    %180 = vmatprep.subr.bf16.mxu0 0
    %181 = vmatpush2.bf16.xpose.msra.mxu0 0
    %182 = vmatprep.subr.bf16.mxu0 0
    %183 = vmatpush2.bf16.xpose.msra.mxu0 0
    %184 = vmatprep.mubr.bf16.mxu0 0
    %185 = vmatmul.mubr.bf16.gmra.mxu0 %v88
    %v186 = vpop.f32.mrf.mxu0
    %v187 = vadd.f32 0.0, %v186
    %v188 = vpop.f32.mrf.mxu0
    %v189 = vpop.f32.mrf.mxu0
    %v190 = vadd.f32 0.0, %v189
    %v191 = vpop.f32.mrf.mxu0
    %192 = vmatprep.mubr.bf16.mxu0 0
    %193 = vmatmul.mubr.bf16.gmra.mxu0 %v89
    %v194 = vpop.f32.mrf.mxu0
    %v195 = vadd.f32 0.0, %v194
    %v196 = vpop.f32.mrf.mxu0
    %v197 = vpop.f32.mrf.mxu0
    %v198 = vadd.f32 0.0, %v197
    %v199 = vpop.f32.mrf.mxu0
    %200 = vmatprep.mubr.bf16.mxu0 0
    %201 = vmatmul.mubr.bf16.gmra.mxu0 %v90
    %v202 = vpop.f32.mrf.mxu0
    %v203 = vadd.f32 0.0, %v202
    %v204 = vpop.f32.mrf.mxu0
    %v205 = vpop.f32.mrf.mxu0
    %v206 = vadd.f32 0.0, %v205
    %v207 = vpop.f32.mrf.mxu0
    %208 = vmatprep.mubr.bf16.mxu0 0
    %209 = vmatmul.mubr.bf16.gmra.mxu0 %v91
    %v210 = vpop.f32.mrf.mxu0
    %v211 = vadd.f32 0.0, %v210
    %v212 = vpop.f32.mrf.mxu0
    %v213 = vpop.f32.mrf.mxu0
    %v214 = vadd.f32 0.0, %v213
    %v215 = vpop.f32.mrf.mxu0
    %216 = vmatprep.mubr.bf16.mxu0 0
    %217 = vmatmul.mubr.bf16.gmra.mxu0 %v92
    %v218 = vpop.f32.mrf.mxu0
    %v219 = vadd.f32 0.0, %v218
    %v220 = vpop.f32.mrf.mxu0
    %v221 = vpop.f32.mrf.mxu0
    %v222 = vadd.f32 0.0, %v221
    %v223 = vpop.f32.mrf.mxu0
    %224 = vmatprep.mubr.bf16.mxu0 0
    %225 = vmatmul.mubr.bf16.gmra.mxu0 %v93
    %v226 = vpop.f32.mrf.mxu0
    %v227 = vadd.f32 0.0, %v226
    %v228 = vpop.f32.mrf.mxu0
    %v229 = vpop.f32.mrf.mxu0
    %v230 = vadd.f32 0.0, %v229
    %v231 = vpop.f32.mrf.mxu0
    %232 = vmatprep.mubr.bf16.mxu0 0
    %233 = vmatmul.mubr.bf16.gmra.mxu0 %v94
    %v234 = vpop.f32.mrf.mxu0
    %v235 = vadd.f32 0.0, %v234
    %v236 = vpop.f32.mrf.mxu0
    %v237 = vpop.f32.mrf.mxu0
    %v238 = vadd.f32 0.0, %v237
    %v239 = vpop.f32.mrf.mxu0
    %240 = vmatprep.mubr.bf16.mxu0 0
    %241 = vmatmul.mubr.bf16.gmra.mxu0 %v95
    %v242 = vpop.f32.mrf.mxu0
    %v243 = vadd.f32 0.0, %v242
    %v244 = vpop.f32.mrf.mxu0
    %v245 = vpop.f32.mrf.mxu0
    %v246 = vadd.f32 0.0, %v245
    %v247 = vpop.f32.mrf.mxu0
    %248 = vdwg.mxu0
    %v249 = vmul.f32 %v187, 2.0
    %v250 = vmul.f32 %v190, 2.0
    %v251 = vmul.f32 %v195, 2.0
    %v252 = vmul.f32 %v198, 2.0
    %v253 = vmul.f32 %v203, 2.0
    %v254 = vmul.f32 %v206, 2.0
    %v255 = vmul.f32 %v211, 2.0
    %v256 = vmul.f32 %v214, 2.0
    %v257 = vmul.f32 %v219, 2.0
    %v258 = vmul.f32 %v222, 2.0
    %v259 = vmul.f32 %v227, 2.0
    %v260 = vmul.f32 %v230, 2.0
    %v261 = vmul.f32 %v235, 2.0
    %v262 = vmul.f32 %v238, 2.0
    %v263 = vmul.f32 %v243, 2.0
    %v264 = vmul.f32 %v246, 2.0
    %v265 = vsub.f32 2.0, %v249
    %v266 = vsub.f32 2.0, %v250
    %v267 = vsub.f32 2.0, %v251
    %v268 = vsub.f32 2.0, %v252
    %v269 = vsub.f32 2.0, %v253
    %v270 = vsub.f32 2.0, %v254
    %v271 = vsub.f32 2.0, %v255
    %v272 = vsub.f32 2.0, %v256
    %v273 = vsub.f32 2.0, %v257
    %v274 = vsub.f32 2.0, %v258
    %v275 = vsub.f32 2.0, %v259
    %v276 = vsub.f32 2.0, %v260
    %v277 = vsub.f32 2.0, %v261
    %v278 = vsub.f32 2.0, %v262
    %v279 = vsub.f32 2.0, %v263
    %v280 = vsub.f32 2.0, %v264
    %v281 = vmax.f32 %v265, 0.0
    %v282 = vmax.f32 %v266, 0.0
    %v283 = vmax.f32 %v267, 0.0
    %v284 = vmax.f32 %v268, 0.0
    %v285 = vmax.f32 %v269, 0.0
    %v286 = vmax.f32 %v270, 0.0
    %v287 = vmax.f32 %v271, 0.0
    %v288 = vmax.f32 %v272, 0.0
    %v289 = vmax.f32 %v273, 0.0
    %v290 = vmax.f32 %v274, 0.0
    %v291 = vmax.f32 %v275, 0.0
    %v292 = vmax.f32 %v276, 0.0
    %v293 = vmax.f32 %v277, 0.0
    %v294 = vmax.f32 %v278, 0.0
    %v295 = vmax.f32 %v279, 0.0
    %v296 = vmax.f32 %v280, 0.0
    %v297 = vrsqrt.pop %v281
    %v298 = vmul.f32 %v281, %v297
    %vm299 = vcmp.eq.f32.partialorder %v281, inf
    %v300 = vsel %vm299, %v281, %v298
    %vm301 = vcmp.eq.f32.partialorder %v281, 0.0
    %v302 = vand.u32 %v281, 2147483648
    %v303 = vsel %vm301, %v302, %v300
    %v304 = vrsqrt.pop %v282
    %v305 = vmul.f32 %v282, %v304
    %vm306 = vcmp.eq.f32.partialorder %v282, inf
    %v307 = vsel %vm306, %v282, %v305
    %vm308 = vcmp.eq.f32.partialorder %v282, 0.0
    %v309 = vand.u32 %v282, 2147483648
    %v310 = vsel %vm308, %v309, %v307
    %v311 = vrsqrt.pop %v283
    %v312 = vmul.f32 %v283, %v311
    %vm313 = vcmp.eq.f32.partialorder %v283, inf
    %v314 = vsel %vm313, %v283, %v312
    %vm315 = vcmp.eq.f32.partialorder %v283, 0.0
    %v316 = vand.u32 %v283, 2147483648
    %v317 = vsel %vm315, %v316, %v314
    %v318 = vrsqrt.pop %v284
    %v319 = vmul.f32 %v284, %v318
    %vm320 = vcmp.eq.f32.partialorder %v284, inf
    %v321 = vsel %vm320, %v284, %v319
    %vm322 = vcmp.eq.f32.partialorder %v284, 0.0
    %v323 = vand.u32 %v284, 2147483648
    %v324 = vsel %vm322, %v323, %v321
    %v325 = vrsqrt.pop %v285
    %v326 = vmul.f32 %v285, %v325
    %vm327 = vcmp.eq.f32.partialorder %v285, inf
    %v328 = vsel %vm327, %v285, %v326
    %vm329 = vcmp.eq.f32.partialorder %v285, 0.0
    %v330 = vand.u32 %v285, 2147483648
    %v331 = vsel %vm329, %v330, %v328
    %v332 = vrsqrt.pop %v286
    %v333 = vmul.f32 %v286, %v332
    %vm334 = vcmp.eq.f32.partialorder %v286, inf
    %v335 = vsel %vm334, %v286, %v333
    %vm336 = vcmp.eq.f32.partialorder %v286, 0.0
    %v337 = vand.u32 %v286, 2147483648
    %v338 = vsel %vm336, %v337, %v335
    %v339 = vrsqrt.pop %v287
    %v340 = vmul.f32 %v287, %v339
    %vm341 = vcmp.eq.f32.partialorder %v287, inf
    %v342 = vsel %vm341, %v287, %v340
    %vm343 = vcmp.eq.f32.partialorder %v287, 0.0
    %v344 = vand.u32 %v287, 2147483648
    %v345 = vsel %vm343, %v344, %v342
    %v346 = vrsqrt.pop %v288
    %v347 = vmul.f32 %v288, %v346
    %vm348 = vcmp.eq.f32.partialorder %v288, inf
    %v349 = vsel %vm348, %v288, %v347
    %vm350 = vcmp.eq.f32.partialorder %v288, 0.0
    %v351 = vand.u32 %v288, 2147483648
    %v352 = vsel %vm350, %v351, %v349
    %v353 = vrsqrt.pop %v289
    %v354 = vmul.f32 %v289, %v353
    %vm355 = vcmp.eq.f32.partialorder %v289, inf
    %v356 = vsel %vm355, %v289, %v354
    %vm357 = vcmp.eq.f32.partialorder %v289, 0.0
    %v358 = vand.u32 %v289, 2147483648
    %v359 = vsel %vm357, %v358, %v356
    %v360 = vrsqrt.pop %v290
    %v361 = vmul.f32 %v290, %v360
    %vm362 = vcmp.eq.f32.partialorder %v290, inf
    %v363 = vsel %vm362, %v290, %v361
    %vm364 = vcmp.eq.f32.partialorder %v290, 0.0
    %v365 = vand.u32 %v290, 2147483648
    %v366 = vsel %vm364, %v365, %v363
    %v367 = vrsqrt.pop %v291
    %v368 = vmul.f32 %v291, %v367
    %vm369 = vcmp.eq.f32.partialorder %v291, inf
    %v370 = vsel %vm369, %v291, %v368
    %vm371 = vcmp.eq.f32.partialorder %v291, 0.0
    %v372 = vand.u32 %v291, 2147483648
    %v373 = vsel %vm371, %v372, %v370
    %v374 = vrsqrt.pop %v292
    %v375 = vmul.f32 %v292, %v374
    %vm376 = vcmp.eq.f32.partialorder %v292, inf
    %v377 = vsel %vm376, %v292, %v375
    %vm378 = vcmp.eq.f32.partialorder %v292, 0.0
    %v379 = vand.u32 %v292, 2147483648
    %v380 = vsel %vm378, %v379, %v377
    %v381 = vrsqrt.pop %v293
    %v382 = vmul.f32 %v293, %v381
    %vm383 = vcmp.eq.f32.partialorder %v293, inf
    %v384 = vsel %vm383, %v293, %v382
    %vm385 = vcmp.eq.f32.partialorder %v293, 0.0
    %v386 = vand.u32 %v293, 2147483648
    %v387 = vsel %vm385, %v386, %v384
    %v388 = vrsqrt.pop %v294
    %v389 = vmul.f32 %v294, %v388
    %vm390 = vcmp.eq.f32.partialorder %v294, inf
    %v391 = vsel %vm390, %v294, %v389
    %vm392 = vcmp.eq.f32.partialorder %v294, 0.0
    %v393 = vand.u32 %v294, 2147483648
    %v394 = vsel %vm392, %v393, %v391
    %v395 = vrsqrt.pop %v295
    %v396 = vmul.f32 %v295, %v395
    %vm397 = vcmp.eq.f32.partialorder %v295, inf
    %v398 = vsel %vm397, %v295, %v396
    %vm399 = vcmp.eq.f32.partialorder %v295, 0.0
    %v400 = vand.u32 %v295, 2147483648
    %v401 = vsel %vm399, %v400, %v398
    %v402 = vrsqrt.pop %v296
    %v403 = vmul.f32 %v296, %v402
    %vm404 = vcmp.eq.f32.partialorder %v296, inf
    %v405 = vsel %vm404, %v296, %v403
    %vm406 = vcmp.eq.f32.partialorder %v296, 0.0
    %v407 = vand.u32 %v296, 2147483648
    %v408 = vsel %vm406, %v407, %v405
    %v409 = vld [vmem:[%s0] sm:$0xff]
    %v410 = vld [vmem:[%s0 + $0x8] sm:$0xff]
    %v411 = vld [vmem:[%s0 + $0x10] sm:$0xff]
    %v412 = vld [vmem:[%s0 + $0x18] sm:$0xff]
    %v413 = vld [vmem:[%s0 + $0x20] sm:$0xff]
    %v414 = vld [vmem:[%s0 + $0x28] sm:$0xff]
    %v415 = vld [vmem:[%s0 + $0x30] sm:$0xff]
    %v416 = vld [vmem:[%s0 + $0x38] sm:$0xff]
    %v417 = vld [vmem:[%s0 + $0x40] sm:$0xff]
    %v418 = vld [vmem:[%s0 + $0x48] sm:$0xff]
    %v419 = vld [vmem:[%s0 + $0x50] sm:$0xff]
    %v420 = vld [vmem:[%s0 + $0x58] sm:$0xff]
    %v421 = vld [vmem:[%s0 + $0x60] sm:$0xff]
    %v422 = vld [vmem:[%s0 + $0x68] sm:$0xff]
    %v423 = vld [vmem:[%s0 + $0x70] sm:$0xff]
    %v424 = vld [vmem:[%s0 + $0x78] sm:$0xff]
    %v425 = vld [vmem:[%s1] sm:$0x1]
    %426 = vset.pattern.permute.xlu0 0
    %427 = vperm.xlu0 %426, %v409
    %v428 = vpop.permute.xlu0 %427
    %429 = vset.pattern.permute.xlu0 0
    %430 = vperm.xlu0 %429, %v410
    %v431 = vpop.permute.xlu0 %430
    %432 = vset.pattern.permute.xlu0 0
    %433 = vperm.xlu0 %432, %v411
    %v434 = vpop.permute.xlu0 %433
    %435 = vset.pattern.permute.xlu0 0
    %436 = vperm.xlu0 %435, %v412
    %v437 = vpop.permute.xlu0 %436
    %438 = vset.pattern.permute.xlu0 0
    %439 = vperm.xlu0 %438, %v413
    %v440 = vpop.permute.xlu0 %439
    %441 = vset.pattern.permute.xlu0 0
    %442 = vperm.xlu0 %441, %v414
    %v443 = vpop.permute.xlu0 %442
    %444 = vset.pattern.permute.xlu0 0
    %445 = vperm.xlu0 %444, %v415
    %v446 = vpop.permute.xlu0 %445
    %447 = vset.pattern.permute.xlu0 0
    %448 = vperm.xlu0 %447, %v416
    %v449 = vpop.permute.xlu0 %448
    %450 = vset.pattern.permute.xlu0 0
    %451 = vperm.xlu0 %450, %v417
    %v452 = vpop.permute.xlu0 %451
    %453 = vset.pattern.permute.xlu0 0
    %454 = vperm.xlu0 %453, %v418
    %v455 = vpop.permute.xlu0 %454
    %456 = vset.pattern.permute.xlu0 0
    %457 = vperm.xlu0 %456, %v419
    %v458 = vpop.permute.xlu0 %457
    %459 = vset.pattern.permute.xlu0 0
    %460 = vperm.xlu0 %459, %v420
    %v461 = vpop.permute.xlu0 %460
    %462 = vset.pattern.permute.xlu0 0
    %463 = vperm.xlu0 %462, %v421
    %v464 = vpop.permute.xlu0 %463
    %465 = vset.pattern.permute.xlu0 0
    %466 = vperm.xlu0 %465, %v422
    %v467 = vpop.permute.xlu0 %466
    %468 = vset.pattern.permute.xlu0 0
    %469 = vperm.xlu0 %468, %v423
    %v470 = vpop.permute.xlu0 %469
    %471 = vset.pattern.permute.xlu0 0
    %472 = vperm.xlu0 %471, %v424
    %v473 = vpop.permute.xlu0 %472
    %v474 = vlaneseq
    %v475 = vshrl.u32 %v474, 7
    %v476 = vsub.s32 0, %v475
    %v477 = vrot.slane %v425, %v476
    %vm478 = vcmp.eq.s32.totalorder %v428, %v477
    %vm479 = vcmp.eq.s32.totalorder %v431, %v477
    %vm480 = vcmp.eq.s32.totalorder %v434, %v477
    %vm481 = vcmp.eq.s32.totalorder %v437, %v477
    %vm482 = vcmp.eq.s32.totalorder %v440, %v477
    %vm483 = vcmp.eq.s32.totalorder %v443, %v477
    %vm484 = vcmp.eq.s32.totalorder %v446, %v477
    %vm485 = vcmp.eq.s32.totalorder %v449, %v477
    %vm486 = vcmp.eq.s32.totalorder %v452, %v477
    %vm487 = vcmp.eq.s32.totalorder %v455, %v477
    %vm488 = vcmp.eq.s32.totalorder %v458, %v477
    %vm489 = vcmp.eq.s32.totalorder %v461, %v477
    %vm490 = vcmp.eq.s32.totalorder %v464, %v477
    %vm491 = vcmp.eq.s32.totalorder %v467, %v477
    %vm492 = vcmp.eq.s32.totalorder %v470, %v477
    %vm493 = vcmp.eq.s32.totalorder %v473, %v477
    %v494 = vlaneseq
    %v495 = vand.u32 %v494, 127
    %s496 = smul.u32 0, 128
    %v497 = vstv %s496
    %v498 = vadd.s32 %v495, %v497
    %v499 = vlaneseq
    %v500 = vshrl.u32 %v499, 7
    %v501 = vadd.s32 %v500, 8
    %v502 = vadd.s32 %v500, 16
    %v503 = vadd.s32 %v500, 24
    %v504 = vadd.s32 %v500, 32
    %v505 = vadd.s32 %v500, 40
    %v506 = vadd.s32 %v500, 48
    %v507 = vadd.s32 %v500, 56
    %v508 = vadd.s32 %v500, 64
    %v509 = vadd.s32 %v500, 72
    %v510 = vadd.s32 %v500, 80
    %v511 = vadd.s32 %v500, 88
    %v512 = vadd.s32 %v500, 96
    %v513 = vadd.s32 %v500, 104
    %v514 = vadd.s32 %v500, 112
    %v515 = vadd.s32 %v500, 120
    %s516 = smul.u32 0, 128
    %v517 = vstv %s516
    %v518 = vadd.s32 %v500, %v517
    %v519 = vadd.s32 %v501, %v517
    %v520 = vadd.s32 %v502, %v517
    %v521 = vadd.s32 %v503, %v517
    %v522 = vadd.s32 %v504, %v517
    %v523 = vadd.s32 %v505, %v517
    %v524 = vadd.s32 %v506, %v517
    %v525 = vadd.s32 %v507, %v517
    %v526 = vadd.s32 %v508, %v517
    %v527 = vadd.s32 %v509, %v517
    %v528 = vadd.s32 %v510, %v517
    %v529 = vadd.s32 %v511, %v517
    %v530 = vadd.s32 %v512, %v517
    %v531 = vadd.s32 %v513, %v517
    %v532 = vadd.s32 %v514, %v517
    %v533 = vadd.s32 %v515, %v517
    %vm534 = vcmp.ne.s32.totalorder %v498, %v518
    %vm535 = vcmp.ne.s32.totalorder %v498, %v519
    %vm536 = vcmp.ne.s32.totalorder %v498, %v520
    %vm537 = vcmp.ne.s32.totalorder %v498, %v521
    %vm538 = vcmp.ne.s32.totalorder %v498, %v522
    %vm539 = vcmp.ne.s32.totalorder %v498, %v523
    %vm540 = vcmp.ne.s32.totalorder %v498, %v524
    %vm541 = vcmp.ne.s32.totalorder %v498, %v525
    %vm542 = vcmp.ne.s32.totalorder %v498, %v526
    %vm543 = vcmp.ne.s32.totalorder %v498, %v527
    %vm544 = vcmp.ne.s32.totalorder %v498, %v528
    %vm545 = vcmp.ne.s32.totalorder %v498, %v529
    %vm546 = vcmp.ne.s32.totalorder %v498, %v530
    %vm547 = vcmp.ne.s32.totalorder %v498, %v531
    %vm548 = vcmp.ne.s32.totalorder %v498, %v532
    %vm549 = vcmp.ne.s32.totalorder %v498, %v533
    %vm550 = vmand %vm478, %vm534
    %vm551 = vmand %vm479, %vm535
    %vm552 = vmand %vm480, %vm536
    %vm553 = vmand %vm481, %vm537
    %vm554 = vmand %vm482, %vm538
    %vm555 = vmand %vm483, %vm539
    %vm556 = vmand %vm484, %vm540
    %vm557 = vmand %vm485, %vm541
    %vm558 = vmand %vm486, %vm542
    %vm559 = vmand %vm487, %vm543
    %vm560 = vmand %vm488, %vm544
    %vm561 = vmand %vm489, %vm545
    %vm562 = vmand %vm490, %vm546
    %vm563 = vmand %vm491, %vm547
    %vm564 = vmand %vm492, %vm548
    %vm565 = vmand %vm493, %vm549
    %vm566 = vmxor %vm478, 1
    %vm567 = vmxor %vm479, 1
    %vm568 = vmxor %vm480, 1
    %vm569 = vmxor %vm481, 1
    %vm570 = vmxor %vm482, 1
    %vm571 = vmxor %vm483, 1
    %vm572 = vmxor %vm484, 1
    %vm573 = vmxor %vm485, 1
    %vm574 = vmxor %vm486, 1
    %vm575 = vmxor %vm487, 1
    %vm576 = vmxor %vm488, 1
    %vm577 = vmxor %vm489, 1
    %vm578 = vmxor %vm490, 1
    %vm579 = vmxor %vm491, 1
    %vm580 = vmxor %vm492, 1
    %vm581 = vmxor %vm493, 1
    %vm582 = vcmp.lt.s32.totalorder %v518, 16
    %vm583 = vcmp.lt.s32.totalorder %v519, 16
    %vm584 = vcmp.lt.s32.totalorder %v520, 16
    %vm585 = vcmp.lt.s32.totalorder %v521, 16
    %vm586 = vcmp.lt.s32.totalorder %v522, 16
    %vm587 = vcmp.lt.s32.totalorder %v523, 16
    %vm588 = vcmp.lt.s32.totalorder %v524, 16
    %vm589 = vcmp.lt.s32.totalorder %v525, 16
    %vm590 = vcmp.lt.s32.totalorder %v526, 16
    %vm591 = vcmp.lt.s32.totalorder %v527, 16
    %vm592 = vcmp.lt.s32.totalorder %v528, 16
    %vm593 = vcmp.lt.s32.totalorder %v529, 16
    %vm594 = vcmp.lt.s32.totalorder %v530, 16
    %vm595 = vcmp.lt.s32.totalorder %v531, 16
    %vm596 = vcmp.lt.s32.totalorder %v532, 16
    %vm597 = vcmp.lt.s32.totalorder %v533, 16
    %vm598 = vcmp.lt.s32.totalorder %v498, 16
    %v599 = vsel %vm582, 1, 0
    %v600 = vsel %vm583, 1, 0
    %v601 = vsel %vm584, 1, 0
    %v602 = vsel %vm585, 1, 0
    %v603 = vsel %vm586, 1, 0
    %v604 = vsel %vm587, 1, 0
    %v605 = vsel %vm588, 1, 0
    %v606 = vsel %vm589, 1, 0
    %v607 = vsel %vm590, 1, 0
    %v608 = vsel %vm591, 1, 0
    %v609 = vsel %vm592, 1, 0
    %v610 = vsel %vm593, 1, 0
    %v611 = vsel %vm594, 1, 0
    %v612 = vsel %vm595, 1, 0
    %v613 = vsel %vm596, 1, 0
    %v614 = vsel %vm597, 1, 0
    %vm615 = vcmp.eq.s32.totalorder %v599, 1
    %vm616 = vcmp.eq.s32.totalorder %v600, 1
    %vm617 = vcmp.eq.s32.totalorder %v601, 1
    %vm618 = vcmp.eq.s32.totalorder %v602, 1
    %vm619 = vcmp.eq.s32.totalorder %v603, 1
    %vm620 = vcmp.eq.s32.totalorder %v604, 1
    %vm621 = vcmp.eq.s32.totalorder %v605, 1
    %vm622 = vcmp.eq.s32.totalorder %v606, 1
    %vm623 = vcmp.eq.s32.totalorder %v607, 1
    %vm624 = vcmp.eq.s32.totalorder %v608, 1
    %vm625 = vcmp.eq.s32.totalorder %v609, 1
    %vm626 = vcmp.eq.s32.totalorder %v610, 1
    %vm627 = vcmp.eq.s32.totalorder %v611, 1
    %vm628 = vcmp.eq.s32.totalorder %v612, 1
    %vm629 = vcmp.eq.s32.totalorder %v613, 1
    %vm630 = vcmp.eq.s32.totalorder %v614, 1
    %vm631 = vmand %vm615, %vm598
    %vm632 = vmand %vm616, %vm598
    %vm633 = vmand %vm617, %vm598
    %vm634 = vmand %vm618, %vm598
    %vm635 = vmand %vm619, %vm598
    %vm636 = vmand %vm620, %vm598
    %vm637 = vmand %vm621, %vm598
    %vm638 = vmand %vm622, %vm598
    %vm639 = vmand %vm623, %vm598
    %vm640 = vmand %vm624, %vm598
    %vm641 = vmand %vm625, %vm598
    %vm642 = vmand %vm626, %vm598
    %vm643 = vmand %vm627, %vm598
    %vm644 = vmand %vm628, %vm598
    %vm645 = vmand %vm629, %vm598
    %vm646 = vmand %vm630, %vm598
    %vm647 = vmand %vm550, %vm631
    %vm648 = vmand %vm551, %vm632
    %vm649 = vmand %vm552, %vm633
    %vm650 = vmand %vm553, %vm634
    %vm651 = vmand %vm554, %vm635
    %vm652 = vmand %vm555, %vm636
    %vm653 = vmand %vm556, %vm637
    %vm654 = vmand %vm557, %vm638
    %vm655 = vmand %vm558, %vm639
    %vm656 = vmand %vm559, %vm640
    %vm657 = vmand %vm560, %vm641
    %vm658 = vmand %vm561, %vm642
    %vm659 = vmand %vm562, %vm643
    %vm660 = vmand %vm563, %vm644
    %vm661 = vmand %vm564, %vm645
    %vm662 = vmand %vm565, %vm646
    %vm663 = vmand %vm566, %vm631
    %vm664 = vmand %vm567, %vm632
    %vm665 = vmand %vm568, %vm633
    %vm666 = vmand %vm569, %vm634
    %vm667 = vmand %vm570, %vm635
    %vm668 = vmand %vm571, %vm636
    %vm669 = vmand %vm572, %vm637
    %vm670 = vmand %vm573, %vm638
    %vm671 = vmand %vm574, %vm639
    %vm672 = vmand %vm575, %vm640
    %vm673 = vmand %vm576, %vm641
    %vm674 = vmand %vm577, %vm642
    %vm675 = vmand %vm578, %vm643
    %vm676 = vmand %vm579, %vm644
    %vm677 = vmand %vm580, %vm645
    %vm678 = vmand %vm581, %vm646
    %v679 = vsel %vm647, %v303, 0.0
    %v680 = vsel %vm648, %v310, 0.0
    %v681 = vsel %vm649, %v317, 0.0
    %v682 = vsel %vm650, %v324, 0.0
    %v683 = vsel %vm651, %v331, 0.0
    %v684 = vsel %vm652, %v338, 0.0
    %v685 = vsel %vm653, %v345, 0.0
    %v686 = vsel %vm654, %v352, 0.0
    %v687 = vsel %vm655, %v359, 0.0
    %v688 = vsel %vm656, %v366, 0.0
    %v689 = vsel %vm657, %v373, 0.0
    %v690 = vsel %vm658, %v380, 0.0
    %v691 = vsel %vm659, %v387, 0.0
    %v692 = vsel %vm660, %v394, 0.0
    %v693 = vsel %vm661, %v401, 0.0
    %v694 = vsel %vm662, %v408, 0.0
    %v695 = vadd.f32 %v679, %v680
    %v696 = vadd.f32 %v695, %v681
    %v697 = vadd.f32 %v696, %v682
    %v698 = vadd.f32 %v697, %v683
    %v699 = vadd.f32 %v698, %v684
    %v700 = vadd.f32 %v699, %v685
    %v701 = vadd.f32 %v700, %v686
    %v702 = vadd.f32 %v701, %v687
    %v703 = vadd.f32 %v702, %v688
    %v704 = vadd.f32 %v703, %v689
    %v705 = vadd.f32 %v704, %v690
    %v706 = vadd.f32 %v705, %v691
    %v707 = vadd.f32 %v706, %v692
    %v708 = vadd.f32 %v707, %v693
    %v709 = vadd.f32 %v708, %v694
    %710 = vadd.xlane.f32.xlu0 %v709
    %v711 = vpop.xlane.xlu0 %710
    %v712 = vrot.slane %v711, 4
    %v713 = vadd.f32 %v711, %v712
    %v714 = vrot.slane %v713, 2
    %v715 = vadd.f32 %v713, %v714
    %v716 = vrot.slane %v715, 1
    %v717 = vadd.f32 %v715, %v716
    %s718 = vtos %v717
    %vm719 = vcmp.gt.f32.partialorder %v281, 0.0
    %vm720 = vcmp.gt.f32.partialorder %v282, 0.0
    %vm721 = vcmp.gt.f32.partialorder %v283, 0.0
    %vm722 = vcmp.gt.f32.partialorder %v284, 0.0
    %vm723 = vcmp.gt.f32.partialorder %v285, 0.0
    %vm724 = vcmp.gt.f32.partialorder %v286, 0.0
    %vm725 = vcmp.gt.f32.partialorder %v287, 0.0
    %vm726 = vcmp.gt.f32.partialorder %v288, 0.0
    %vm727 = vcmp.gt.f32.partialorder %v289, 0.0
    %vm728 = vcmp.gt.f32.partialorder %v290, 0.0
    %vm729 = vcmp.gt.f32.partialorder %v291, 0.0
    %vm730 = vcmp.gt.f32.partialorder %v292, 0.0
    %vm731 = vcmp.gt.f32.partialorder %v293, 0.0
    %vm732 = vcmp.gt.f32.partialorder %v294, 0.0
    %vm733 = vcmp.gt.f32.partialorder %v295, 0.0
    %vm734 = vcmp.gt.f32.partialorder %v296, 0.0
    %vm735 = vmand %vm647, %vm719
    %vm736 = vmand %vm648, %vm720
    %vm737 = vmand %vm649, %vm721
    %vm738 = vmand %vm650, %vm722
    %vm739 = vmand %vm651, %vm723
    %vm740 = vmand %vm652, %vm724
    %vm741 = vmand %vm653, %vm725
    %vm742 = vmand %vm654, %vm726
    %vm743 = vmand %vm655, %vm727
    %vm744 = vmand %vm656, %vm728
    %vm745 = vmand %vm657, %vm729
    %vm746 = vmand %vm658, %vm730
    %vm747 = vmand %vm659, %vm731
    %vm748 = vmand %vm660, %vm732
    %vm749 = vmand %vm661, %vm733
    %vm750 = vmand %vm662, %vm734
    %v751 = vsel %vm735, 1.0, 0.0
    %v752 = vsel %vm736, 1.0, 0.0
    %v753 = vsel %vm737, 1.0, 0.0
    %v754 = vsel %vm738, 1.0, 0.0
    %v755 = vsel %vm739, 1.0, 0.0
    %v756 = vsel %vm740, 1.0, 0.0
    %v757 = vsel %vm741, 1.0, 0.0
    %v758 = vsel %vm742, 1.0, 0.0
    %v759 = vsel %vm743, 1.0, 0.0
    %v760 = vsel %vm744, 1.0, 0.0
    %v761 = vsel %vm745, 1.0, 0.0
    %v762 = vsel %vm746, 1.0, 0.0
    %v763 = vsel %vm747, 1.0, 0.0
    %v764 = vsel %vm748, 1.0, 0.0
    %v765 = vsel %vm749, 1.0, 0.0
    %v766 = vsel %vm750, 1.0, 0.0
    %v767 = vadd.f32 %v751, %v752
    %v768 = vadd.f32 %v767, %v753
    %v769 = vadd.f32 %v768, %v754
    %v770 = vadd.f32 %v769, %v755
    %v771 = vadd.f32 %v770, %v756
    %v772 = vadd.f32 %v771, %v757
    %v773 = vadd.f32 %v772, %v758
    %v774 = vadd.f32 %v773, %v759
    %v775 = vadd.f32 %v774, %v760
    %v776 = vadd.f32 %v775, %v761
    %v777 = vadd.f32 %v776, %v762
    %v778 = vadd.f32 %v777, %v763
    %v779 = vadd.f32 %v778, %v764
    %v780 = vadd.f32 %v779, %v765
    %v781 = vadd.f32 %v780, %v766
    %782 = vadd.xlane.f32.xlu0 %v781
    %v783 = vpop.xlane.xlu0 %782
    %v784 = vrot.slane %v783, 4
    %v785 = vadd.f32 %v783, %v784
    %v786 = vrot.slane %v785, 2
    %v787 = vadd.f32 %v785, %v786
    %v788 = vrot.slane %v787, 1
    %v789 = vadd.f32 %v787, %v788
    %s790 = vtos %v789
    %vm791 = vcmp.lt.f32.partialorder %v303, 1.0
    %vm792 = vcmp.lt.f32.partialorder %v310, 1.0
    %vm793 = vcmp.lt.f32.partialorder %v317, 1.0
    %vm794 = vcmp.lt.f32.partialorder %v324, 1.0
    %vm795 = vcmp.lt.f32.partialorder %v331, 1.0
    %vm796 = vcmp.lt.f32.partialorder %v338, 1.0
    %vm797 = vcmp.lt.f32.partialorder %v345, 1.0
    %vm798 = vcmp.lt.f32.partialorder %v352, 1.0
    %vm799 = vcmp.lt.f32.partialorder %v359, 1.0
    %vm800 = vcmp.lt.f32.partialorder %v366, 1.0
    %vm801 = vcmp.lt.f32.partialorder %v373, 1.0
    %vm802 = vcmp.lt.f32.partialorder %v380, 1.0
    %vm803 = vcmp.lt.f32.partialorder %v387, 1.0
    %vm804 = vcmp.lt.f32.partialorder %v394, 1.0
    %vm805 = vcmp.lt.f32.partialorder %v401, 1.0
    %vm806 = vcmp.lt.f32.partialorder %v408, 1.0
    %vm807 = vmand %vm663, %vm791
    %vm808 = vmand %vm664, %vm792
    %vm809 = vmand %vm665, %vm793
    %vm810 = vmand %vm666, %vm794
    %vm811 = vmand %vm667, %vm795
    %vm812 = vmand %vm668, %vm796
    %vm813 = vmand %vm669, %vm797
    %vm814 = vmand %vm670, %vm798
    %vm815 = vmand %vm671, %vm799
    %vm816 = vmand %vm672, %vm800
    %vm817 = vmand %vm673, %vm801
    %vm818 = vmand %vm674, %vm802
    %vm819 = vmand %vm675, %vm803
    %vm820 = vmand %vm676, %vm804
    %vm821 = vmand %vm677, %vm805
    %vm822 = vmand %vm678, %vm806
    %v823 = vsub.f32 1.0, %v303
    %v824 = vsub.f32 1.0, %v310
    %v825 = vsub.f32 1.0, %v317
    %v826 = vsub.f32 1.0, %v324
    %v827 = vsub.f32 1.0, %v331
    %v828 = vsub.f32 1.0, %v338
    %v829 = vsub.f32 1.0, %v345
    %v830 = vsub.f32 1.0, %v352
    %v831 = vsub.f32 1.0, %v359
    %v832 = vsub.f32 1.0, %v366
    %v833 = vsub.f32 1.0, %v373
    %v834 = vsub.f32 1.0, %v380
    %v835 = vsub.f32 1.0, %v387
    %v836 = vsub.f32 1.0, %v394
    %v837 = vsub.f32 1.0, %v401
    %v838 = vsub.f32 1.0, %v408
    %v839 = vsel %vm807, %v823, 0.0
    %v840 = vsel %vm808, %v824, 0.0
    %v841 = vsel %vm809, %v825, 0.0
    %v842 = vsel %vm810, %v826, 0.0
    %v843 = vsel %vm811, %v827, 0.0
    %v844 = vsel %vm812, %v828, 0.0
    %v845 = vsel %vm813, %v829, 0.0
    %v846 = vsel %vm814, %v830, 0.0
    %v847 = vsel %vm815, %v831, 0.0
    %v848 = vsel %vm816, %v832, 0.0
    %v849 = vsel %vm817, %v833, 0.0
    %v850 = vsel %vm818, %v834, 0.0
    %v851 = vsel %vm819, %v835, 0.0
    %v852 = vsel %vm820, %v836, 0.0
    %v853 = vsel %vm821, %v837, 0.0
    %v854 = vsel %vm822, %v838, 0.0
    %v855 = vadd.f32 %v839, %v840
    %v856 = vadd.f32 %v855, %v841
    %v857 = vadd.f32 %v856, %v842
    %v858 = vadd.f32 %v857, %v843
    %v859 = vadd.f32 %v858, %v844
    %v860 = vadd.f32 %v859, %v845
    %v861 = vadd.f32 %v860, %v846
    %v862 = vadd.f32 %v861, %v847
    %v863 = vadd.f32 %v862, %v848
    %v864 = vadd.f32 %v863, %v849
    %v865 = vadd.f32 %v864, %v850
    %v866 = vadd.f32 %v865, %v851
    %v867 = vadd.f32 %v866, %v852
    %v868 = vadd.f32 %v867, %v853
    %v869 = vadd.f32 %v868, %v854
    %870 = vadd.xlane.f32.xlu0 %v869
    %v871 = vpop.xlane.xlu0 %870
    %v872 = vrot.slane %v871, 4
    %v873 = vadd.f32 %v871, %v872
    %v874 = vrot.slane %v873, 2
    %v875 = vadd.f32 %v873, %v874
    %v876 = vrot.slane %v875, 1
    %v877 = vadd.f32 %v875, %v876
    %s878 = vtos %v877
    %v879 = vsel %vm807, 1.0, 0.0
    %v880 = vsel %vm808, 1.0, 0.0
    %v881 = vsel %vm809, 1.0, 0.0
    %v882 = vsel %vm810, 1.0, 0.0
    %v883 = vsel %vm811, 1.0, 0.0
    %v884 = vsel %vm812, 1.0, 0.0
    %v885 = vsel %vm813, 1.0, 0.0
    %v886 = vsel %vm814, 1.0, 0.0
    %v887 = vsel %vm815, 1.0, 0.0
    %v888 = vsel %vm816, 1.0, 0.0
    %v889 = vsel %vm817, 1.0, 0.0
    %v890 = vsel %vm818, 1.0, 0.0
    %v891 = vsel %vm819, 1.0, 0.0
    %v892 = vsel %vm820, 1.0, 0.0
    %v893 = vsel %vm821, 1.0, 0.0
    %v894 = vsel %vm822, 1.0, 0.0
    %v895 = vadd.f32 %v879, %v880
    %v896 = vadd.f32 %v895, %v881
    %v897 = vadd.f32 %v896, %v882
    %v898 = vadd.f32 %v897, %v883
    %v899 = vadd.f32 %v898, %v884
    %v900 = vadd.f32 %v899, %v885
    %v901 = vadd.f32 %v900, %v886
    %v902 = vadd.f32 %v901, %v887
    %v903 = vadd.f32 %v902, %v888
    %v904 = vadd.f32 %v903, %v889
    %v905 = vadd.f32 %v904, %v890
    %v906 = vadd.f32 %v905, %v891
    %v907 = vadd.f32 %v906, %v892
    %v908 = vadd.f32 %v907, %v893
    %v909 = vadd.f32 %v908, %v894
    %910 = vadd.xlane.f32.xlu0 %v909
    %v911 = vpop.xlane.xlu0 %910
    %v912 = vrot.slane %v911, 4
    %v913 = vadd.f32 %v911, %v912
    %v914 = vrot.slane %v913, 2
    %v915 = vadd.f32 %v913, %v914
    %v916 = vrot.slane %v915, 1
    %v917 = vadd.f32 %v915, %v916
    %s918 = vtos %v917
    %vm919 = vcmp.eq.s32.totalorder %v500, 0
    %v920 = vstv %s718
    %v921 = vsel %vm919, %v920, 0.0
    %vm922 = vcmp.eq.s32.totalorder %v500, 1
    %v923 = vstv %s790
    %v924 = vsel %vm922, %v923, %v921
    %vm925 = vcmp.eq.s32.totalorder %v500, 2
    %v926 = vstv %s878
    %v927 = vsel %vm925, %v926, %v924
    %vm928 = vcmp.eq.s32.totalorder %v500, 3
    %v929 = vstv %s918
    %v930 = vsel %vm928, %v929, %v927
    %v931 = vld [vmem:[#allocation2] sm:$0xff]
    %v932 = vadd.f32 %v931, %v930
    %933 = vst [vmem:[#allocation2] sm:$0xff] %v932
    // Predicated region
    $region22: #{tpu_custom_call.1} parent=1 // pred_check
      _
    $region23: #{tpu_custom_call.1} parent=1 // pred_check_branch
      %935 = sbr.rel (0) target = $region25
    $region24: #{tpu_custom_call.1} parent=1 // pred_region
      %s937 = ssub.s32 128, 128
      %938 = vsyncadd [#allocation3], %s937
      %s940 = sshll.u32 [#allocation2], 4
      %s941 = int_to_ptr.vmem [resolvable:$true] %s940
      %943 = dma.vmem_to_hbm [thread:$0]  %s941, 128, %s4, [#allocation3]
    $region25: #{tpu_custom_call.1} parent=1 // pred_fallthru
      _
    // Predicated region
    $region26: #{tpu_custom_call.1} parent=1 // pred_check
      _
    $region27: #{tpu_custom_call.1} parent=1 // pred_check_branch
      %945 = sbr.rel (0) target = $region29
    $region28: #{tpu_custom_call.1} parent=1 // pred_region
      %946 = dma.done [#allocation3], 128
    $region29: #{tpu_custom_call.1} parent=1 // pred_fallthru
      _
    %947 = vsyncpa [#allocation3], 1

</llo_original>
